<compile_context>
chip_gen: v5e
topology: v5e:2x2
jax: 0.10.0
libtpu: 0.0.40
codegen_flags: <defaults>
</compile_context>

<pallas_src>
import math
import functools

import jax
import jax.numpy as jnp
from jax.experimental import pallas as pl
from jax.experimental.pallas import tpu as pltpu


# ----------------------------- small helpers -----------------------------

def _round_up(x, m):
    return ((x + m - 1) // m) * m


def _pad_axis(x, axis, target):
    pad = target - x.shape[axis]
    if pad == 0:
        return x
    widths = [(0, 0)] * x.ndim
    widths[axis] = (0, pad)
    return jnp.pad(x, widths)


def _mosaic_params(dims, bytes_needed):
    # Explicit scoped-VMEM budget: ~double-buffered blocks + headroom, clamped so the
    # same config is safe on v5e/v6e (128 MiB physical) and v7x (64 MiB physical).
    limit = int(min(max(2 * bytes_needed + (4 << 20), 32 << 20), 64 << 20))
    return pltpu.CompilerParams(dimension_semantics=dims, vmem_limit_bytes=limit)


# ----------------------------- tiled linear (bias [+ relu]) -----------------------------

def _matmul_kernel(x_ref, w_ref, b_ref, o_ref, acc_ref, *, relu):
    @pl.when(pl.program_id(2) == 0)
    def _():
        acc_ref[...] = jnp.zeros_like(acc_ref)

    # bf16 MXU operands, f32 accumulation (weights are already bf16; cast is a no-op)
    acc_ref[...] += jnp.dot(x_ref[...].astype(jnp.bfloat16),
                            w_ref[...].astype(jnp.bfloat16),
                            preferred_element_type=jnp.float32)

    @pl.when(pl.program_id(2) == pl.num_programs(2) - 1)
    def _():
        y = acc_ref[...] + b_ref[...]
        if relu:
            y = jnp.maximum(y, 0.0)
        o_ref[...] = y.astype(o_ref.dtype)


def pallas_linear(x, w, b, relu=False, tm=512, tn=512, tk=512):
    """x: [M, K] f32 @ w: [K, N] bf16 + b: [N] f32, tiled with an f32 VMEM accumulator."""
    M, K = x.shape
    N = w.shape[1]
    tm = M if M <= tm else tm
    tn = N if N <= tn else tn
    tk = K if K <= tk else tk
    Mp, Np, Kp = _round_up(M, tm), _round_up(N, tn), _round_up(K, tk)

    # TODO(synk): for prod shapes pre-pad weights once at init; at these shapes the
    # weight pads below are no-ops (tn/tk clamp to the full dims), only x may pad.
    xp = _pad_axis(_pad_axis(x, 0, Mp), 1, Kp)
    wp = _pad_axis(_pad_axis(w, 0, Kp), 1, Np)
    bp = _pad_axis(b.reshape(1, N), 1, Np)

    blk_bytes = tm * tk * 4 + tk * tn * 2 + tn * 4 + 2 * tm * tn * 4
    out = pl.pallas_call(
        functools.partial(_matmul_kernel, relu=relu),
        out_shape=jax.ShapeDtypeStruct((Mp, Np), jnp.float32),
        grid=(Mp // tm, Np // tn, Kp // tk),
        in_specs=[
            pl.BlockSpec((tm, tk), lambda i, j, k: (i, k)),
            pl.BlockSpec((tk, tn), lambda i, j, k: (k, j)),
            pl.BlockSpec((1, tn), lambda i, j, k: (0, j)),
        ],
        out_specs=pl.BlockSpec((tm, tn), lambda i, j, k: (i, j)),
        scratch_shapes=[pltpu.VMEM((tm, tn), jnp.float32)],
        compiler_params=_mosaic_params(("parallel", "parallel", "arbitrary"), blk_bytes),
    )(xp, wp, bp)
    if (Mp, Np) != (M, N):
        out = out[:M, :N]
    return out


# ----------------------------- fused residual add + LayerNorm -----------------------------

def _add_layernorm_kernel(x_ref, r_ref, g_ref, b_ref, o_ref, *, eps):
    x = x_ref[...].astype(jnp.float32) + r_ref[...].astype(jnp.float32)
    mu = jnp.mean(x, axis=-1, keepdims=True)
    var = jnp.mean((x - mu) ** 2, axis=-1, keepdims=True)
    y = (x - mu) * jax.lax.rsqrt(var + eps)
    o_ref[...] = (y * g_ref[...] + b_ref[...]).astype(o_ref.dtype)


def pallas_add_layernorm(x, r, g, b, tm=512):
    """LayerNorm(x + r) over rows; large row tiles amortize per-step overhead."""
    M, D = x.shape
    tm = M if M <= tm else tm
    Mp = _round_up(M, tm)
    xp = _pad_axis(x, 0, Mp)
    rp = _pad_axis(r, 0, Mp)
    blk_bytes = 4 * tm * D * 4
    out = pl.pallas_call(
        functools.partial(_add_layernorm_kernel, eps=1e-5),
        out_shape=jax.ShapeDtypeStruct((Mp, D), jnp.float32),
        grid=(Mp // tm,),
        in_specs=[
            pl.BlockSpec((tm, D), lambda i: (i, 0)),
            pl.BlockSpec((tm, D), lambda i: (i, 0)),
            pl.BlockSpec((1, D), lambda i: (0, 0)),
            pl.BlockSpec((1, D), lambda i: (0, 0)),
        ],
        out_specs=pl.BlockSpec((tm, D), lambda i: (i, 0)),
        compiler_params=_mosaic_params(("parallel",), blk_bytes),
    )(xp, rp, g.reshape(1, D), b.reshape(1, D))
    return out[:M] if Mp != M else out


# ----------------------------- fused masked multi-head attention -----------------------------

def _attention_kernel(len_ref, q_ref, k_ref, v_ref, o_ref, *, num_heads, scale, causal):
    b = pl.program_id(0)
    kv_len = len_ref[b]
    Tq = q_ref.shape[1]
    Tk = k_ref.shape[1]
    D = q_ref.shape[2]
    dh = D // num_heads
    neg = jnp.finfo(jnp.float32).min            # dtype-aware mask constant

    # mask built in-kernel from lengths (no HBM mask traffic)
    col = jax.lax.broadcasted_iota(jnp.int32, (Tq, Tk), 1)
    keep = col < kv_len
    if causal:
        row = jax.lax.broadcasted_iota(jnp.int32, (Tq, Tk), 0)
        keep = jnp.logical_and(keep, col <= row)

    outs = []
    for h in range(num_heads):                  # small static unroll (num_heads=4)
        lo = h * dh
        qh = q_ref[0, :, lo:lo + dh].astype(jnp.bfloat16)   # [Tq, dh]
        kh = k_ref[0, :, lo:lo + dh].astype(jnp.bfloat16)   # [Tk, dh]
        vh = v_ref[0, :, lo:lo + dh].astype(jnp.bfloat16)   # [Tk, dh]
        s = jax.lax.dot_general(qh, kh, (((1,), (1,)), ((), ())),
                                preferred_element_type=jnp.float32) * scale
        s = jnp.where(keep, s, neg)
        s = s - jnp.max(s, axis=-1, keepdims=True)
        e = jnp.exp(s)
        p = e / jnp.sum(e, axis=-1, keepdims=True)          # exact divide (f32 parity)
        outs.append(jnp.dot(p.astype(jnp.bfloat16), vh,
                            preferred_element_type=jnp.float32))
    # single full-width lane-dense store (no per-head partial stores)
    o_ref[0, :, :] = jnp.concatenate(outs, axis=-1).astype(o_ref.dtype)


def pallas_attention(q_arr, k_arr, v_arr, qb, kb, vb, kv_len, num_heads, d_model, causal):
    """q/k/v are lane-blocks (block index qb/kb/vb) of possibly-fused projection outputs.

    Passing the same fused qkv (or kv) array multiple times with different last-dim block
    indices avoids the HBM copies a `qkv[..., :D]` slice in JAX would materialize.
    """
    B, Tq = q_arr.shape[0], q_arr.shape[1]
    Tk = k_arr.shape[1]
    D = d_model
    kern = functools.partial(_attention_kernel, num_heads=num_heads,
                             scale=1.0 / math.sqrt(D // num_heads), causal=causal)
    blk_bytes = (2 * Tq * D + 2 * Tk * D) * 4
    return pl.pallas_call(
        kern,
        out_shape=jax.ShapeDtypeStruct((B, Tq, D), jnp.float32),
        grid_spec=pltpu.PrefetchScalarGridSpec(
            num_scalar_prefetch=1,
            grid=(B,),
            in_specs=[
                pl.BlockSpec((1, Tq, D), lambda b, lens: (b, 0, qb)),
                pl.BlockSpec((1, Tk, D), lambda b, lens: (b, 0, kb)),
                pl.BlockSpec((1, Tk, D), lambda b, lens: (b, 0, vb)),
            ],
            out_specs=pl.BlockSpec((1, Tq, D), lambda b, lens: (b, 0, 0)),
        ),
        compiler_params=_mosaic_params(("parallel",), blk_bytes),
    )(kv_len.astype(jnp.int32), q_arr, k_arr, v_arr)


# ------------------- fused tied output projection + label-smoothed xent -------------------
# Vocab axis tiled with an online logsumexp: logits never hit HBM, embedding DMA pipelines.

def _logits_xent_kernel(x_ref, emb_ref, tgt_ref, loss_ref, correct_ref, valid_ref,
                        m_sc, l_sc, slog_sc, tlogit_sc, *, eps, ignore_id, vocab):
    i = pl.program_id(0)
    j = pl.program_id(1)
    nv = pl.num_programs(1)
    tv = emb_ref.shape[0]
    NEG = jnp.finfo(jnp.float32).min

    @pl.when(jnp.logical_and(i == 0, j == 0))
    def _():
        loss_ref[...] = jnp.zeros_like(loss_ref)
        correct_ref[...] = jnp.zeros_like(correct_ref)
        valid_ref[...] = jnp.zeros_like(valid_ref)

    @pl.when(j == 0)
    def _():
        m_sc[...] = jnp.full_like(m_sc, NEG)
        l_sc[...] = jnp.zeros_like(l_sc)
        slog_sc[...] = jnp.zeros_like(slog_sc)
        tlogit_sc[...] = jnp.zeros_like(tlogit_sc)

    x = x_ref[...].astype(jnp.bfloat16)          # [R, D]
    emb = emb_ref[...]                           # [tv, D] bf16 tied embedding tile
    logits = jax.lax.dot_general(x, emb, (((1,), (1,)), ((), ())),
                                 preferred_element_type=jnp.float32)   # [R, tv]
    R = logits.shape[0]
    tgt = tgt_ref[...]                           # [R, 1] int32
    col = j * tv + jax.lax.broadcasted_iota(jnp.int32, (R, tv), 1)
    in_vocab = col < vocab                       # mask vocab padding columns
    masked = jnp.where(in_vocab, logits, NEG)

    # online logsumexp update
    tile_max = jnp.max(masked, axis=-1, keepdims=True)
    m_new = jnp.maximum(m_sc[...], tile_max)
    l_sc[...] = (l_sc[...] * jnp.exp(m_sc[...] - m_new)
                 + jnp.sum(jnp.exp(masked - m_new), axis=-1, keepdims=True))
    m_sc[...] = m_new
    # running sum of raw logits -> mean_logp = (slog - V*lse)/V (one pass, no 2nd onehot)
    slog_sc[...] += jnp.sum(jnp.where(in_vocab, logits, 0.0), axis=-1, keepdims=True)
    onehot = jnp.logical_and(col == tgt, in_vocab).astype(jnp.float32)
    tlogit_sc[...] += jnp.sum(logits * onehot, axis=-1, keepdims=True)

    @pl.when(j == nv - 1)
    def _():
        lse = m_sc[...] + jnp.log(l_sc[...])                    # [R, 1]
        valid = (tgt != ignore_id).astype(jnp.float32)          # [R, 1]
        tgt_logp = tlogit_sc[...] - lse
        mean_logp = (slog_sc[...] - vocab * lse) / vocab
        # torch CrossEntropyLoss(label_smoothing=eps): (1-eps)*NLL + eps*mean_j(-logp_j)
        loss_rows = -((1.0 - eps) * tgt_logp + eps * mean_logp) * valid
        correct_rows = (tlogit_sc[...] >= m_sc[...]).astype(jnp.float32) * valid
        loss_ref[...] += jnp.sum(loss_rows, axis=0, keepdims=True)
        correct_ref[...] += jnp.sum(correct_rows, axis=0, keepdims=True)
        valid_ref[...] += jnp.sum(valid, axis=0, keepdims=True)


def pallas_logits_xent(x, emb, tgt, eps, ignore_id, tm=256, tv=1024):
    """Tied output projection + CE / accuracy stats, reduced in-kernel to scalars."""
    M, D = x.shape
    V = emb.shape[0]
    tm = min(tm, _round_up(M, 8))
    Mp = _round_up(M, tm)
    tv = min(tv, _round_up(V, 8))
    Vp = _round_up(V, tv)
    xp = _pad_axis(x, 0, Mp)
    embp = _pad_axis(emb, 0, Vp)                 # no-op at this vocab; TODO(synk): hoist
    tgtp = jnp.full((Mp, 1), ignore_id, jnp.int32).at[:M, 0].set(tgt.astype(jnp.int32))

    kern = functools.partial(_logits_xent_kernel, eps=eps, ignore_id=ignore_id, vocab=V)
    blk_bytes = tm * D * 4 + tv * D * 2 + tm * tv * 4 + 5 * tm * 4
    out_shapes = tuple(jax.ShapeDtypeStruct((1, 1), jnp.float32) for _ in range(3))
    loss_s, correct_s, valid_s = pl.pallas_call(
        kern,
        out_shape=out_shapes,
        grid=(Mp // tm, Vp // tv),
        in_specs=[
            pl.BlockSpec((tm, D), lambda i, j: (i, 0)),
            pl.BlockSpec((tv, D), lambda i, j: (j, 0)),
            pl.BlockSpec((tm, 1), lambda i, j: (i, 0)),
        ],
        out_specs=tuple(pl.BlockSpec((1, 1), lambda i, j: (0, 0)) for _ in range(3)),
        scratch_shapes=[pltpu.VMEM((tm, 1), jnp.float32) for _ in range(4)],
        compiler_params=_mosaic_params(("arbitrary", "arbitrary"), blk_bytes),
    )(xp, embp, tgtp)
    return loss_s[0, 0], correct_s[0, 0], valid_s[0, 0]


# ----------------------------- JAX glue (model) -----------------------------

def positional_encoding(T, d_model):
    pos = jnp.arange(T, dtype=jnp.float32)[:, None]
    i = jnp.arange(0, d_model, 2, dtype=jnp.float32)
    div = jnp.exp(-(jnp.log(10000.0) / d_model) * i)
    pe = jnp.zeros((T, d_model), jnp.float32)
    pe = pe.at[:, 0::2].set(jnp.sin(pos * div))
    pe = pe.at[:, 1::2].set(jnp.cos(pos * div))
    return pe[None]  # [1, T, D]


def add_layer_norm(x, a, p):
    B, T, D = x.shape
    return pallas_add_layernorm(x.reshape(B * T, D), a.reshape(B * T, D),
                                p["g"], p["b"]).reshape(B, T, D)


def ffn(x, p):
    B, T, D = x.shape
    h = pallas_linear(x.reshape(B * T, D), p["w1"], p["b1"], relu=True)
    y = pallas_linear(h, p["w2"], p["b2"])
    return y.reshape(B, T, D)


def multi_head_attention(x_q, x_kv, kv_len, p, num_heads, *, causal, fused_self):
    B, Tq, D = x_q.shape
    Tk = x_kv.shape[1]
    lane_ok = (D % 128 == 0)
    if fused_self:
        qkv = pallas_linear(x_q.reshape(B * Tq, D), p["wqkv"], p["bqkv"]).reshape(B, Tq, 3 * D)
        if lane_ok:   # select Q/K/V lane-blocks from the fused output via BlockSpec
            o = pallas_attention(qkv, qkv, qkv, 0, 1, 2, kv_len, num_heads, D, causal)
        else:
            q, k, v = qkv[..., :D], qkv[..., D:2 * D], qkv[..., 2 * D:]
            o = pallas_attention(q, k, v, 0, 0, 0, kv_len, num_heads, D, causal)
    else:
        q = pallas_linear(x_q.reshape(B * Tq, D), p["wq"], p["bq"]).reshape(B, Tq, D)
        kv = pallas_linear(x_kv.reshape(B * Tk, D), p["wkv"], p["bkv"]).reshape(B, Tk, 2 * D)
        if lane_ok:
            o = pallas_attention(q, kv, kv, 0, 0, 1, kv_len, num_heads, D, causal)
        else:
            k, v = kv[..., :D], kv[..., D:]
            o = pallas_attention(q, k, v, 0, 0, 0, kv_len, num_heads, D, causal)
    o = pallas_linear(o.reshape(B * Tq, D), p["wo"], p["bo"])
    return o.reshape(B, Tq, D)


def encoder(x, enc_len, layers, num_heads):
    for p in layers:
        a = multi_head_attention(x, x, enc_len, p["self_attn"], num_heads,
                                 causal=False, fused_self=True)
        x = add_layer_norm(x, a, p["ln1"])
        f = ffn(x, p["ffn"])
        x = add_layer_norm(x, f, p["ln2"])
    return x


def decoder(x_enc, x_dec, enc_len, dec_len, layers, num_heads):
    x = x_dec
    for p in layers:
        a = multi_head_attention(x, x, dec_len, p["self_attn"], num_heads,
                                 causal=True, fused_self=True)
        x = add_layer_norm(x, a, p["ln1"])
        c = multi_head_attention(x, x_enc, enc_len, p["cross_attn"], num_heads,
                                 causal=False, fused_self=False)
        x = add_layer_norm(x, c, p["ln2"])
        f = ffn(x, p["ffn"])
        x = add_layer_norm(x, f, p["ln3"])
    return x


def model_forward(params, enc_token, enc_len, dec_token, dec_len, tgt_token, cfg):
    d_model = cfg["d_model"]
    num_heads = cfg["num_heads"]
    B, T1 = enc_token.shape
    T2 = dec_token.shape[1]
    scale = math.sqrt(d_model)
    emb = params["emb"]                                  # tied input/output embedding (bf16)

    x_enc = emb[enc_token].astype(jnp.float32) * scale + positional_encoding(T1, d_model)
    # dropout1: identity (deterministic forward)
    x_enc = encoder(x_enc, enc_len, params["encoder"], num_heads)

    x_dec = emb[dec_token].astype(jnp.float32) * scale + positional_encoding(T2, d_model)
    # dropout2: identity
    x_dec = decoder(x_enc, x_dec, enc_len, dec_len, params["decoder"], num_heads)

    # fused tied output projection + CE / accuracy (logits stay in VMEM)
    loss_sum, correct_sum, valid_sum = pallas_logits_xent(
        x_dec.reshape(B * T2, d_model), emb, tgt_token.reshape(-1),
        cfg["label_smoothing"], cfg["ignore_token_id"])

    loss = loss_sum / B          # torch: CrossEntropyLoss(reduction='sum') / batch size
    acc = correct_sum / valid_sum
    return loss, {"loss": loss, "acc": acc}


# ----------------------------- parameter init -----------------------------

def init_params(key, vocab, d_model, d_ff, num_layers, pad_id):
    keys = jax.random.split(key, 256)
    it = iter(keys)

    def dense(kin, kout):
        w = (jax.random.normal(next(it), (kin, kout), jnp.float32) * 0.05).astype(jnp.bfloat16)
        return w, jnp.zeros((kout,), jnp.float32)

    def ln():
        return {"g": jnp.ones((d_model,), jnp.float32),
                "b": jnp.zeros((d_model,), jnp.float32)}

    def self_attn_params():                              # pre-fused QKV weights (bf16)
        wq, bq = dense(d_model, d_model)
        wk, bk = dense(d_model, d_model)
        wv, bv = dense(d_model, d_model)
        wo, bo = dense(d_model, d_model)
        return {"wqkv": jnp.concatenate([wq, wk, wv], axis=1),
                "bqkv": jnp.concatenate([bq, bk, bv]),
                "wo": wo, "bo": bo}

    def cross_attn_params():                             # pre-fused KV weights (bf16)
        wq, bq = dense(d_model, d_model)
        wk, bk = dense(d_model, d_model)
        wv, bv = dense(d_model, d_model)
        wo, bo = dense(d_model, d_model)
        return {"wq": wq, "bq": bq,
                "wkv": jnp.concatenate([wk, wv], axis=1),
                "bkv": jnp.concatenate([bk, bv]),
                "wo": wo, "bo": bo}

    def ffn_params():
        w1, b1 = dense(d_model, d_ff)
        w2, b2 = dense(d_ff, d_model)
        return {"w1": w1, "b1": b1, "w2": w2, "b2": b2}

    emb = (jax.random.normal(next(it), (vocab, d_model), jnp.float32) * 0.05).astype(jnp.bfloat16)
    emb = emb.at[pad_id].set(0.0)                        # padding_idx row is zero

    enc_layers = [{"self_attn": self_attn_params(), "ffn": ffn_params(),
                   "ln1": ln(), "ln2": ln()} for _ in range(num_layers)]
    dec_layers = [{"self_attn": self_attn_params(), "cross_attn": cross_attn_params(),
                   "ffn": ffn_params(), "ln1": ln(), "ln2": ln(), "ln3": ln()}
                  for _ in range(num_layers)]
    return {"emb": emb, "encoder": enc_layers, "decoder": dec_layers}


# ----------------------------- main -----------------------------

if __name__ == "__main__":
    cfg = dict(vocab_size=64, d_model=128, num_heads=4, d_ff=256, num_layers=2,
               dropout_rate=0.0, pad_token_id=0, bos_token_id=1, eos_token_id=1,
               label_smoothing=0.1, ignore_token_id=-100)
    B, T1, T2 = 2, 8, 8

    key = jax.random.PRNGKey(0)
    kp, k1, k2, k3 = jax.random.split(key, 4)
    params = init_params(kp, cfg["vocab_size"], cfg["d_model"], cfg["d_ff"],
                         cfg["num_layers"], cfg["pad_token_id"])

    enc_token = jax.random.randint(k1, (B, T1), 2, cfg["vocab_size"], dtype=jnp.int32)
    dec_token = jax.random.randint(k2, (B, T2), 2, cfg["vocab_size"], dtype=jnp.int32)
    tgt_token = jax.random.randint(k3, (B, T2), 2, cfg["vocab_size"], dtype=jnp.int32)
    enc_len = jnp.array([T1, 6], jnp.int32)
    dec_len = jnp.array([T2, 5], jnp.int32)
    enc_token = enc_token.at[1, 6:].set(cfg["pad_token_id"])
    dec_token = dec_token.at[1, 5:].set(cfg["pad_token_id"])
    tgt_token = tgt_token.at[1, 5:].set(cfg["ignore_token_id"])

    loss, stats = model_forward(params, enc_token, enc_len, dec_token, dec_len,
                                tgt_token, cfg)
    jax.block_until_ready(loss)
    assert bool(jnp.isfinite(loss)), "loss is not finite"
    assert 0.0 <= float(stats["acc"]) <= 1.0, "accuracy out of range"
    print("KERNEL_OK")
</pallas_src>

<mosaic_0001>
module attributes {stable_mosaic.version = 11 : i64} {
  func.func @_matmul_kernel(%arg0: i32, %arg1: i32, %arg2: i32, %arg3: memref<16x128xf32, #tpu.memory_space<vmem>>, %arg4: memref<128x384xbf16, #tpu.memory_space<vmem>>, %arg5: memref<1x384xf32, #tpu.memory_space<vmem>>, %arg6: memref<16x384xf32, #tpu.memory_space<vmem>>, %arg7: memref<16x384xf32, #tpu.memory_space<vmem>>) attributes {dimension_semantics = [#tpu.dimension_semantics<parallel>, #tpu.dimension_semantics<parallel>, #tpu.dimension_semantics<arbitrary>], iteration_bounds = array<i64: 1, 1, 1>, scalar_prefetch = 0 : i64, scratch_operands = 1 : i64, tpu.core_type = #tpu.core_type<tc>, window_params = [{transform_indices = @transform_0, window_bounds = array<i64: 16, 128>}, {transform_indices = @transform_1, window_bounds = array<i64: 128, 384>}, {transform_indices = @transform_2, window_bounds = array<i64: 1, 384>}, {transform_indices = @transform_3, window_bounds = array<i64: 16, 384>}]} {
    %c0_i32 = arith.constant 0 : i32
    %0 = arith.cmpi eq, %arg2, %c0_i32 : i32
    %1 = arith.extui %0 : i1 to i32
    %c0_i32_0 = arith.constant 0 : i32
    %2 = arith.cmpi ne, %1, %c0_i32_0 : i32
    scf.if %2 {
      %cst_10 = arith.constant 0.000000e+00 : f32
      %13 = vector.broadcast %cst_10 : f32 to vector<16x384xf32>
      %c0_11 = arith.constant 0 : index
      %c0_12 = arith.constant 0 : index
      %14 = vector.load %arg7[%c0_11, %c0_12] : memref<16x384xf32, #tpu.memory_space<vmem>>, vector<16x384xf32>
      tpu.vector_store %arg7[%c0_11, %c0_12], %13 {strides = array<i32>} : memref<16x384xf32, #tpu.memory_space<vmem>>, vector<16x384xf32>,
    } else {
    }
    %c0 = arith.constant 0 : index
    %c0_1 = arith.constant 0 : index
    %3 = vector.load %arg7[%c0, %c0_1] : memref<16x384xf32, #tpu.memory_space<vmem>>, vector<16x384xf32>
    %c0_2 = arith.constant 0 : index
    %c0_3 = arith.constant 0 : index
    %4 = vector.load %arg3[%c0_2, %c0_3] : memref<16x128xf32, #tpu.memory_space<vmem>>, vector<16x128xf32>
    %5 = arith.truncf %4 : vector<16x128xf32> to vector<16x128xbf16>
    %c0_4 = arith.constant 0 : index
    %c0_5 = arith.constant 0 : index
    %6 = vector.load %arg4[%c0_4, %c0_5] : memref<128x384xbf16, #tpu.memory_space<vmem>>, vector<128x384xbf16>
    %cst = arith.constant dense<0.000000e+00> : vector<16x384xf32>
    %7 = tpu.matmul %5, %6, %cst {dimension_numbers = #tpu.dot_dimension_numbers<[1], [0], [0], [1], [0, 0, 1, 1], [], []>} : vector<16x128xbf16>, vector<128x384xbf16>, vector<16x384xf32> -> vector<16x384xf32>
    %8 = arith.addf %3, %7 : vector<16x384xf32>
    %c0_6 = arith.constant 0 : index
    %c0_7 = arith.constant 0 : index
    %9 = vector.load %arg7[%c0_6, %c0_7] : memref<16x384xf32, #tpu.memory_space<vmem>>, vector<16x384xf32>
    tpu.vector_store %arg7[%c0_6, %c0_7], %8 {strides = array<i32>} : memref<16x384xf32, #tpu.memory_space<vmem>>, vector<16x384xf32>,
    %c0_i32_8 = arith.constant 0 : i32
    %10 = arith.cmpi eq, %arg2, %c0_i32_8 : i32
    %11 = arith.extui %10 : i1 to i32
    %c0_i32_9 = arith.constant 0 : i32
    %12 = arith.cmpi ne, %11, %c0_i32_9 : i32
    scf.if %12 {
      %c0_10 = arith.constant 0 : index
      %c0_11 = arith.constant 0 : index
      %13 = vector.load %arg7[%c0_10, %c0_11] : memref<16x384xf32, #tpu.memory_space<vmem>>, vector<16x384xf32>
      %c0_12 = arith.constant 0 : index
      %c0_13 = arith.constant 0 : index
      %14 = vector.load %arg5[%c0_12, %c0_13] : memref<1x384xf32, #tpu.memory_space<vmem>>, vector<1x384xf32>
      %15 = vector.broadcast %14 : vector<1x384xf32> to vector<16x384xf32>
      %16 = arith.addf %13, %15 : vector<16x384xf32>
      %c0_14 = arith.constant 0 : index
      %c0_15 = arith.constant 0 : index
      %17 = vector.load %arg6[%c0_14, %c0_15] : memref<16x384xf32, #tpu.memory_space<vmem>>, vector<16x384xf32>
      tpu.vector_store %arg6[%c0_14, %c0_15], %16 {strides = array<i32>} : memref<16x384xf32, #tpu.memory_space<vmem>>, vector<16x384xf32>,
    } else {
    }
    return
  }
  func.func @transform_0(%arg0: i32, %arg1: i32, %arg2: i32) -> (i32, i32) {
    %c0_i32 = arith.constant 0 : i32
    return %arg0, %arg2 : i32, i32
  }
  func.func @transform_1(%arg0: i32, %arg1: i32, %arg2: i32) -> (i32, i32) {
    %c0_i32 = arith.constant 0 : i32
    return %arg2, %arg1 : i32, i32
  }
  func.func @transform_2(%arg0: i32, %arg1: i32, %arg2: i32) -> (i32, i32) {
    %c0_i32 = arith.constant 0 : i32
    %c0_i32_0 = arith.constant 0 : i32
    return %c0_i32, %arg1 : i32, i32
  }
  func.func @transform_3(%arg0: i32, %arg1: i32, %arg2: i32) -> (i32, i32) {
    %c0_i32 = arith.constant 0 : i32
    return %arg0, %arg1 : i32, i32
  }
}

</mosaic_0001>

<llo_original>
// kernel: tpu_custom_call.1
$region0: #{tpu_custom_call.1}
  #allocation0 [shape = 'u32[]', space=smem, size = 0x4, offset = 0x4, fixed_abs, tag = 'smem constant byte address 0x4 - core index']
  #allocation1 [shape = 'u32[72,128]{1,0:T(1,128)}', space=vmem, size = 0x9000, scoped, tag = 'internal scratch']
  #allocation2 [shape = 'f32[16,384]{1,0:T(8,128)}', space=vmem, size = 0x6000, scoped, tag = 'scratch operand']
  %s0 = inlined_call_operand.hbm [shape: f32[16,128], index: 0, kind: input, shape index: {}]
  %s1 = inlined_call_operand.hbm [shape: bf16[128,384], index: 1, kind: input, shape index: {}]
  %s2 = inlined_call_operand.hbm [shape: f32[1,384], index: 2, kind: input, shape index: {}]
  %s3 = inlined_call_operand.hbm [shape: f32[16,384], index: 3, kind: output, shape index: {}]
  %s4 = sld [smem:[#allocation0]]
  $region42: #{tpu_custom_call.1} parent=0
    _
  %s6 = ssub.s32 1, %s4
  %s7 = scalar_select 0, %s6, %s4
  $region1: #{tpu_custom_call.1} parent=0
    #allocation3 [shape = 'u8[8192]{0}', space=vmem, size = 0x2000, scoped, tag = 'input window, operand 0, single buffered']
    #allocation4 [shape = 's32[1]{0}', space=sflag, size = 0x4, scoped, tag = 'scoped memory for tpu_custom_call.1']
    #allocation5 [shape = 's32[1]{0}', space=sflag, size = 0x4, scoped, tag = 'scoped memory for tpu_custom_call.1']
    #allocation6 [shape = 'u8[98304]{0}', space=vmem, size = 0x18000, scoped, tag = 'input window, operand 1, single buffered']
    #allocation7 [shape = 's32[1]{0}', space=sflag, size = 0x4, scoped, tag = 'scoped memory for tpu_custom_call.1']
    #allocation8 [shape = 'u8[1536]{0}', space=vmem, size = 0x800, scoped, tag = 'input window, operand 2, single buffered']
    #allocation9 [shape = 'u8[24576]{0}', space=vmem, size = 0x6000, scoped, tag = 'output window, operand 0, single buffered']
    %8 = vsyncpa [#allocation4], 0
    %9 = vsyncpa [#allocation7], 0
    %10 = vsyncpa [#allocation5], 0
    // Predicated region
    $region2: #{tpu_custom_call.1} parent=1 // pred_check
      _
    $region3: #{tpu_custom_call.1} parent=1 // pred_check_branch
      %12 = sbr.rel (0) target = $region5
    $region4: #{tpu_custom_call.1} parent=1 // pred_region
      %14 = vsyncadd [#allocation4], 0
      %s15 = sshll.u32 %s0, 4
      %s16 = int_to_ptr.hbm [resolvable:$true] %s15
      %s17 = sshll.u32 [#allocation3], 4
      %s18 = int_to_ptr.vmem [resolvable:$true] %s17
      %23 = dma.hbm_to_vmem [thread:$0]  %s16, 256, %s18, [#allocation4], 128, 128, 8
    $region5: #{tpu_custom_call.1} parent=1 // pred_fallthru
      _
    // Predicated region
    $region6: #{tpu_custom_call.1} parent=1 // pred_check
      _
    $region7: #{tpu_custom_call.1} parent=1 // pred_check_branch
      %25 = sbr.rel (0) target = $region9
    $region8: #{tpu_custom_call.1} parent=1 // pred_region
      %27 = vsyncadd [#allocation7], 0
      %s28 = sshll.u32 %s1, 4
      %s29 = int_to_ptr.hbm [resolvable:$true] %s28
      %s30 = sshll.u32 [#allocation6], 4
      %s31 = int_to_ptr.vmem [resolvable:$true] %s30
      %36 = dma.hbm_to_vmem [thread:$0]  %s29, 3072, %s31, [#allocation7], 192, 192, 12
    $region9: #{tpu_custom_call.1} parent=1 // pred_fallthru
      _
    // Predicated region
    $region10: #{tpu_custom_call.1} parent=1 // pred_check
      _
    $region11: #{tpu_custom_call.1} parent=1 // pred_check_branch
      %38 = sbr.rel (0) target = $region13
    $region12: #{tpu_custom_call.1} parent=1 // pred_region
      %40 = vsyncadd [#allocation7], 0
      %s42 = sshll.u32 %s2, 4
      %s43 = int_to_ptr.hbm [resolvable:$true] %s42
      %s44 = sshll.u32 [#allocation8], 4
      %s45 = int_to_ptr.vmem [resolvable:$true] %s44
      %47 = dma.hbm_to_vmem [thread:$0]  %s43, 48, %s45, [#allocation7]
    $region13: #{tpu_custom_call.1} parent=1 // pred_fallthru
      _
    // Predicated region
    $region14: #{tpu_custom_call.1} parent=1 // pred_check
      _
    $region15: #{tpu_custom_call.1} parent=1 // pred_check_branch
      %49 = sbr.rel (0) target = $region17
    $region16: #{tpu_custom_call.1} parent=1 // pred_region
      %51 = dma.done [#allocation4], 256
    $region17: #{tpu_custom_call.1} parent=1 // pred_fallthru
      _
    // Predicated region
    $region18: #{tpu_custom_call.1} parent=1 // pred_check
      _
    $region19: #{tpu_custom_call.1} parent=1 // pred_check_branch
      %53 = sbr.rel (0) target = $region21
    $region20: #{tpu_custom_call.1} parent=1 // pred_region
      %55 = dma.done [#allocation7], 3072
    $region21: #{tpu_custom_call.1} parent=1 // pred_fallthru
      _
    // Predicated region
    $region22: #{tpu_custom_call.1} parent=1 // pred_check
      _
    $region23: #{tpu_custom_call.1} parent=1 // pred_check_branch
      %57 = sbr.rel (0) target = $region25
    $region24: #{tpu_custom_call.1} parent=1 // pred_region
      %59 = dma.done [#allocation7], 48
    $region25: #{tpu_custom_call.1} parent=1 // pred_fallthru
      _
    %p60 = scmp.eq.s32.totalorder 0, 0
    // Predicated region
    $region26: #{tpu_custom_call.1} parent=1 // pred_check
      %p61 = pneg %p60
    $region27: #{tpu_custom_call.1} parent=1 // pred_check_branch
      %63 = sbr.rel (%p61) target = $region29
    $region28: #{tpu_custom_call.1} parent=1 // pred_region
      %64 = vst [vmem:[#allocation2] sm:$0xff] 0.0
      %65 = vst [vmem:[#allocation2 + $0x8] sm:$0xff] 0.0
      %66 = vst [vmem:[#allocation2 + $0x10] sm:$0xff] 0.0
      %67 = vst [vmem:[#allocation2 + $0x18] sm:$0xff] 0.0
      %68 = vst [vmem:[#allocation2 + $0x20] sm:$0xff] 0.0
      %69 = vst [vmem:[#allocation2 + $0x28] sm:$0xff] 0.0
    $region29: #{tpu_custom_call.1} parent=1 // pred_fallthru
      _
    %v70 = vld [vmem:[#allocation2] sm:$0xff]
    %v71 = vld [vmem:[#allocation2 + $0x8] sm:$0xff]
    %v72 = vld [vmem:[#allocation2 + $0x10] sm:$0xff]
    %v73 = vld [vmem:[#allocation2 + $0x18] sm:$0xff]
    %v74 = vld [vmem:[#allocation2 + $0x20] sm:$0xff]
    %v75 = vld [vmem:[#allocation2 + $0x28] sm:$0xff]
    %v76 = vld [vmem:[#allocation3] sm:$0xff]
    %v77 = vld [vmem:[#allocation3 + $0x8] sm:$0xff]
    %v78 = vpack.c.bf16 %v77, %v76
    %v79 = vld [vmem:[#allocation6] sm:$0xff]
    %v80 = vld [vmem:[#allocation6 + $0x8] sm:$0xf]
    %v81 = vld [vmem:[#allocation6 + $0xc] sm:$0xff]
    %v82 = vld [vmem:[#allocation6 + $0x14] sm:$0xf]
    %v83 = vld [vmem:[#allocation6 + $0x18] sm:$0xff]
    %v84 = vld [vmem:[#allocation6 + $0x20] sm:$0xf]
    %v85 = vld [vmem:[#allocation6 + $0x24] sm:$0xff]
    %v86 = vld [vmem:[#allocation6 + $0x2c] sm:$0xf]
    %v87 = vld [vmem:[#allocation6 + $0x30] sm:$0xff]
    %v88 = vld [vmem:[#allocation6 + $0x38] sm:$0xf]
    %v89 = vld [vmem:[#allocation6 + $0x3c] sm:$0xff]
    %v90 = vld [vmem:[#allocation6 + $0x44] sm:$0xf]
    %v91 = vld [vmem:[#allocation6 + $0x48] sm:$0xff]
    %v92 = vld [vmem:[#allocation6 + $0x50] sm:$0xf]
    %v93 = vld [vmem:[#allocation6 + $0x54] sm:$0xff]
    %v94 = vld [vmem:[#allocation6 + $0x5c] sm:$0xf]
    %v95 = vld [vmem:[#allocation6 + $0x60] sm:$0xff]
    %v96 = vld [vmem:[#allocation6 + $0x68] sm:$0xf]
    %v97 = vld [vmem:[#allocation6 + $0x6c] sm:$0xff]
    %v98 = vld [vmem:[#allocation6 + $0x74] sm:$0xf]
    %v99 = vld [vmem:[#allocation6 + $0x78] sm:$0xff]
    %v100 = vld [vmem:[#allocation6 + $0x80] sm:$0xf]
    %v101 = vld [vmem:[#allocation6 + $0x84] sm:$0xff]
    %v102 = vld [vmem:[#allocation6 + $0x8c] sm:$0xf]
    %v103 = vld [vmem:[#allocation6 + $0x90] sm:$0xff]
    %v104 = vld [vmem:[#allocation6 + $0x98] sm:$0xf]
    %v105 = vld [vmem:[#allocation6 + $0x9c] sm:$0xff]
    %v106 = vld [vmem:[#allocation6 + $0xa4] sm:$0xf]
    %v107 = vld [vmem:[#allocation6 + $0xa8] sm:$0xff]
    %v108 = vld [vmem:[#allocation6 + $0xb0] sm:$0xf]
    %v109 = vld [vmem:[#allocation6 + $0xb4] sm:$0xff]
    %v110 = vld [vmem:[#allocation6 + $0xbc] sm:$0xf]
    %v143 = vunpack.c.l.b16 %v79
    %v144 = vunpack.c.h.b16 %v79
    %v145 = vunpack.c.l.b16 %v80
    %v146 = vunpack.c.l.b16 %v81
    %v147 = vunpack.c.h.b16 %v81
    %v148 = vunpack.c.l.b16 %v82
    %v149 = vunpack.c.l.b16 %v83
    %v150 = vunpack.c.h.b16 %v83
    %v151 = vunpack.c.l.b16 %v84
    %v152 = vunpack.c.l.b16 %v85
    %v153 = vunpack.c.h.b16 %v85
    %v154 = vunpack.c.l.b16 %v86
    %v155 = vunpack.c.l.b16 %v87
    %v156 = vunpack.c.h.b16 %v87
    %v157 = vunpack.c.l.b16 %v88
    %v158 = vunpack.c.l.b16 %v89
    %v159 = vunpack.c.h.b16 %v89
    %v160 = vunpack.c.l.b16 %v90
    %v161 = vunpack.c.l.b16 %v91
    %v162 = vunpack.c.h.b16 %v91
    %v163 = vunpack.c.l.b16 %v92
    %v164 = vunpack.c.l.b16 %v93
    %v165 = vunpack.c.h.b16 %v93
    %v166 = vunpack.c.l.b16 %v94
    %v167 = vunpack.c.l.b16 %v95
    %v168 = vunpack.c.h.b16 %v95
    %v169 = vunpack.c.l.b16 %v96
    %v170 = vunpack.c.l.b16 %v97
    %v171 = vunpack.c.h.b16 %v97
    %v172 = vunpack.c.l.b16 %v98
    %v173 = vunpack.c.l.b16 %v99
    %v174 = vunpack.c.h.b16 %v99
    %v175 = vunpack.c.l.b16 %v100
    %v176 = vunpack.c.l.b16 %v101
    %v177 = vunpack.c.h.b16 %v101
    %v178 = vunpack.c.l.b16 %v102
    %v179 = vunpack.c.l.b16 %v103
    %v180 = vunpack.c.h.b16 %v103
    %v181 = vunpack.c.l.b16 %v104
    %v182 = vunpack.c.l.b16 %v105
    %v183 = vunpack.c.h.b16 %v105
    %v184 = vunpack.c.l.b16 %v106
    %v185 = vunpack.c.l.b16 %v107
    %v186 = vunpack.c.h.b16 %v107
    %v187 = vunpack.c.l.b16 %v108
    %v188 = vunpack.c.l.b16 %v109
    %v189 = vunpack.c.h.b16 %v109
    %v190 = vunpack.c.l.b16 %v110
    %v191 = vpack.c.b16 %v146, %v143
    %v192 = vpack.c.b16 %v147, %v144
    %v193 = vpack.c.b16 %v148, %v145
    %v194 = vpack.c.b16 %v152, %v149
    %v195 = vpack.c.b16 %v153, %v150
    %v196 = vpack.c.b16 %v154, %v151
    %v197 = vpack.c.b16 %v158, %v155
    %v198 = vpack.c.b16 %v159, %v156
    %v199 = vpack.c.b16 %v160, %v157
    %v200 = vpack.c.b16 %v164, %v161
    %v201 = vpack.c.b16 %v165, %v162
    %v202 = vpack.c.b16 %v166, %v163
    %v203 = vpack.c.b16 %v170, %v167
    %v204 = vpack.c.b16 %v171, %v168
    %v205 = vpack.c.b16 %v172, %v169
    %v206 = vpack.c.b16 %v176, %v173
    %v207 = vpack.c.b16 %v177, %v174
    %v208 = vpack.c.b16 %v178, %v175
    %v209 = vpack.c.b16 %v182, %v179
    %v210 = vpack.c.b16 %v183, %v180
    %v211 = vpack.c.b16 %v184, %v181
    %v212 = vpack.c.b16 %v188, %v185
    %v213 = vpack.c.b16 %v189, %v186
    %v214 = vpack.c.b16 %v190, %v187
    %239 = vmatpush.bf16.msra.mxu0 %v212
    %240 = vmatpush.bf16.msra.mxu0 %v209
    %241 = vmatpush.bf16.msra.mxu0 %v206
    %242 = vmatpush.bf16.msra.mxu0 %v203
    %243 = vmatpush.bf16.msra.mxu0 %v200
    %244 = vmatpush.bf16.msra.mxu0 %v197
    %245 = vmatpush.bf16.msra.mxu0 %v194
    %246 = vmatpush.bf16.msra.mxu0 %v191
    %247 = vmatmul.bf16.gmra.mxu0 %v78
    %v248 = vpop.f32.mrf.mxu0
    %v249 = vadd.f32 0.0, %v248
    %v250 = vpop.f32.mrf.mxu0
    %v251 = vadd.f32 0.0, %v250
    %252 = vdwg.mxu0
    %253 = vmatpush.bf16.msra.mxu0 %v213
    %254 = vmatpush.bf16.msra.mxu0 %v210
    %255 = vmatpush.bf16.msra.mxu0 %v207
    %256 = vmatpush.bf16.msra.mxu0 %v204
    %257 = vmatpush.bf16.msra.mxu0 %v201
    %258 = vmatpush.bf16.msra.mxu0 %v198
    %259 = vmatpush.bf16.msra.mxu0 %v195
    %260 = vmatpush.bf16.msra.mxu0 %v192
    %261 = vmatmul.bf16.gmra.mxu0 %v78
    %v262 = vpop.f32.mrf.mxu0
    %v263 = vadd.f32 0.0, %v262
    %v264 = vpop.f32.mrf.mxu0
    %v265 = vadd.f32 0.0, %v264
    %266 = vdwg.mxu0
    %267 = vmatpush.bf16.msra.mxu0 %v214
    %268 = vmatpush.bf16.msra.mxu0 %v211
    %269 = vmatpush.bf16.msra.mxu0 %v208
    %270 = vmatpush.bf16.msra.mxu0 %v205
    %271 = vmatpush.bf16.msra.mxu0 %v202
    %272 = vmatpush.bf16.msra.mxu0 %v199
    %273 = vmatpush.bf16.msra.mxu0 %v196
    %274 = vmatpush.bf16.msra.mxu0 %v193
    %275 = vmatmul.bf16.gmra.mxu0 %v78
    %v276 = vpop.f32.mrf.mxu0
    %v277 = vadd.f32 0.0, %v276
    %v278 = vpop.f32.mrf.mxu0
    %v279 = vadd.f32 0.0, %v278
    %280 = vdwg.mxu0
    %v281 = vadd.f32 %v70, %v249
    %v282 = vadd.f32 %v71, %v263
    %v283 = vadd.f32 %v72, %v277
    %v284 = vadd.f32 %v73, %v251
    %v285 = vadd.f32 %v74, %v265
    %v286 = vadd.f32 %v75, %v279
    %287 = vst [vmem:[#allocation2] sm:$0xff] %v281
    %288 = vst [vmem:[#allocation2 + $0x8] sm:$0xff] %v282
    %289 = vst [vmem:[#allocation2 + $0x10] sm:$0xff] %v283
    %290 = vst [vmem:[#allocation2 + $0x18] sm:$0xff] %v284
    %291 = vst [vmem:[#allocation2 + $0x20] sm:$0xff] %v285
    %292 = vst [vmem:[#allocation2 + $0x28] sm:$0xff] %v286
    // Predicated region
    $region30: #{tpu_custom_call.1} parent=1 // pred_check
      %p293 = pneg %p60
    $region31: #{tpu_custom_call.1} parent=1 // pred_check_branch
      %295 = sbr.rel (%p293) target = $region33
    $region32: #{tpu_custom_call.1} parent=1 // pred_region
      %v296 = vld [vmem:[#allocation2] sm:$0xff]
      %v297 = vld [vmem:[#allocation2 + $0x8] sm:$0xff]
      %v298 = vld [vmem:[#allocation2 + $0x10] sm:$0xff]
      %v299 = vld [vmem:[#allocation2 + $0x18] sm:$0xff]
      %v300 = vld [vmem:[#allocation2 + $0x20] sm:$0xff]
      %v301 = vld [vmem:[#allocation2 + $0x28] sm:$0xff]
      %v302 = vld [vmem:[#allocation8] sm:$0x7]
      %v304 = vperm.slane %v302, 0
      %v305 = vperm.slane %v302, 1
      %v306 = vperm.slane %v302, 2
      %v310 = vadd.f32 %v296, %v304
      %v311 = vadd.f32 %v297, %v305
      %v312 = vadd.f32 %v298, %v306
      %v313 = vadd.f32 %v299, %v304
      %v314 = vadd.f32 %v300, %v305
      %v315 = vadd.f32 %v301, %v306
      %316 = vst [vmem:[#allocation9] sm:$0xff] %v310
      %317 = vst [vmem:[#allocation9 + $0x8] sm:$0xff] %v311
      %318 = vst [vmem:[#allocation9 + $0x10] sm:$0xff] %v312
      %319 = vst [vmem:[#allocation9 + $0x18] sm:$0xff] %v313
      %320 = vst [vmem:[#allocation9 + $0x20] sm:$0xff] %v314
      %321 = vst [vmem:[#allocation9 + $0x28] sm:$0xff] %v315
    $region33: #{tpu_custom_call.1} parent=1 // pred_fallthru
      _
    // Predicated region
    $region34: #{tpu_custom_call.1} parent=1 // pred_check
      _
    $region35: #{tpu_custom_call.1} parent=1 // pred_check_branch
      %323 = sbr.rel (0) target = $region37
    $region36: #{tpu_custom_call.1} parent=1 // pred_region
      %325 = vsyncadd [#allocation5], 0
      %s326 = sshll.u32 [#allocation9], 4
      %s327 = int_to_ptr.vmem [resolvable:$true] %s326
      %s328 = sshll.u32 %s3, 4
      %s329 = int_to_ptr.hbm [resolvable:$true] %s328
      %334 = dma.vmem_to_hbm [thread:$0]  %s327, 768, %s329, [#allocation5], 384, 384, 24
    $region37: #{tpu_custom_call.1} parent=1 // pred_fallthru
      _
    // Predicated region
    $region38: #{tpu_custom_call.1} parent=1 // pred_check
      _
    $region39: #{tpu_custom_call.1} parent=1 // pred_check_branch
      %336 = sbr.rel (0) target = $region41
    $region40: #{tpu_custom_call.1} parent=1 // pred_region
      %338 = dma.done [#allocation5], 768
    $region41: #{tpu_custom_call.1} parent=1 // pred_fallthru
      _
    %339 = vsyncpa [#allocation4], 1
    %340 = vsyncpa [#allocation7], 1
    %341 = vsyncpa [#allocation5], 1

</llo_original>
